<compile_context>
chip_gen: v7x
topology: tpu7x:2x2x1
jax: 0.10.0
libtpu: 0.0.40
codegen_flags: <defaults>
</compile_context>

<pallas_src>
import math

import jax
import jax.numpy as jnp
from jax.experimental import pallas as pl
from jax.experimental.pallas import tpu as pltpu


def _cdiv(a, b):
    return -(-a // b)


def _round_up(n, m):
    return ((n + m - 1) // m) * m


# --------------------------------------------------------------------------
# Kernels (one batch tile each; all operands already row-packed / block-diag)
# --------------------------------------------------------------------------

def _ae_fused_kernel(x_ref, w1_ref, b1_ref, w23_ref, b23_ref, w4_ref, b4_ref,
                     out_ref):
    """3-matmul path: the two activation-free middle linears are pre-fused.

    h = relu(x @ w1 + b1)
    d = relu(h @ (w2 @ w3) + (b2 @ w3 + b3))
    y = d @ w4 + b4
    """
    x = x_ref[...]
    h = jnp.dot(x, w1_ref[...], preferred_element_type=jnp.float32) + b1_ref[...]
    h = jnp.maximum(h, 0.0)
    d = jnp.dot(h.astype(w23_ref.dtype), w23_ref[...],
                preferred_element_type=jnp.float32) + b23_ref[...]
    d = jnp.maximum(d, 0.0)
    y = jnp.dot(d.astype(w4_ref.dtype), w4_ref[...],
                preferred_element_type=jnp.float32) + b4_ref[...]
    out_ref[...] = y.astype(out_ref.dtype)


def _ae_unfused_kernel(x_ref, w1_ref, b1_ref, w2_ref, b2_ref, w3_ref, b3_ref,
                       w4_ref, b4_ref, out_ref):
    """4-matmul path (used when the fused H0xH0 weight would be too large)."""
    x = x_ref[...]
    h = jnp.dot(x, w1_ref[...], preferred_element_type=jnp.float32) + b1_ref[...]
    h = jnp.maximum(h, 0.0)
    z = jnp.dot(h.astype(w2_ref.dtype), w2_ref[...],
                preferred_element_type=jnp.float32) + b2_ref[...]
    d = jnp.dot(z.astype(w3_ref.dtype), w3_ref[...],
                preferred_element_type=jnp.float32) + b3_ref[...]
    d = jnp.maximum(d, 0.0)
    y = jnp.dot(d.astype(w4_ref.dtype), w4_ref[...],
                preferred_element_type=jnp.float32) + b4_ref[...]
    out_ref[...] = y.astype(out_ref.dtype)


# --------------------------------------------------------------------------
# Wrapper
# --------------------------------------------------------------------------

def autoencoder_forward(x, params, *, block_batch=2048, use_bf16_inputs=False,
                        fuse_middle=None, input_buffering=None):
    """Forward pass of the autoencoder via a single Pallas TPU kernel.

    x: (B, D) array.  params: dict from init_params.
    block_batch: packed (128-lane) rows per grid step; 2048 packed rows of
      f32 x/out is ~1 MiB per buffer, so even with double buffering this is
      far inside VMEM on v5e/v6e/v7x while amortizing per-step overhead.
    use_bf16_inputs: stage x and weights in bf16 (f32 accumulation stays).
      Halves HBM traffic for this memory-bound kernel; relaxes the numeric
      tolerance vs the f32 reference.
    fuse_middle: None = auto (fuse encoder.2+decoder.0 only while the fused
      packed weight stays <= 4 MiB, i.e. comfortably VMEM-resident on v7x).
    input_buffering: optional int; pipeline depth for the streaming x/out
      BlockSpecs (pl.Buffered(n)) if DMA is still exposed behind compute.
    """
    B, D = x.shape
    out_dtype = x.dtype
    comp_dtype = jnp.bfloat16 if use_bf16_inputs else x.dtype

    H0 = params["w1"].shape[1]
    H1 = params["w2"].shape[1]

    # ---- lane-dense row packing factor: R logical rows per 128-lane row ----
    R = (128 // D) if (D < 128 and 128 % D == 0) else 1
    Dp = R * D

    # ---- gate the middle-linear fusion on fused-weight VMEM residency ----
    if fuse_middle is None:
        fused_bytes = (R * H0) * (R * H0) * jnp.dtype(comp_dtype).itemsize
        fuse_middle = fused_bytes <= (4 << 20)

    def pack_w(w):
        # Block-diagonal replication keeps the packed-row matmul exact
        # (off-diagonal zero blocks contribute exact 0.0 to the f32 acc).
        if R > 1:
            w = jnp.kron(jnp.eye(R, dtype=w.dtype), w)
        return w.astype(comp_dtype)

    def pack_b(b):
        # Biases stay f32: they are added to the f32 accumulator on the VPU.
        return jnp.tile(b, (1, R)) if R > 1 else b

    if fuse_middle:
        w23 = params["w2"] @ params["w3"]
        b23 = params["b2"] @ params["w3"] + params["b3"]
        weights = [pack_w(params["w1"]), pack_b(params["b1"]),
                   pack_w(w23), pack_b(b23),
                   pack_w(params["w4"]), pack_b(params["b4"])]
        kernel = _ae_fused_kernel
    else:
        weights = [pack_w(params["w1"]), pack_b(params["b1"]),
                   pack_w(params["w2"]), pack_b(params["b2"]),
                   pack_w(params["w3"]), pack_b(params["b3"]),
                   pack_w(params["w4"]), pack_b(params["b4"])]
        kernel = _ae_unfused_kernel

    # ---- balanced batch tiling: pick n_tiles first, then a sublane-aligned
    # tile, so padding is <= one sublane group per tile (not up to TB rows) ----
    sub = 16 if use_bf16_inputs else 8          # bf16 packs 16 sublanes/vreg
    rows = _cdiv(B, R)                          # packed rows needed
    n_tiles = max(1, _cdiv(rows, block_batch))
    TB = _round_up(_cdiv(rows, n_tiles), sub)
    rows_p = n_tiles * TB
    Bp = rows_p * R

    xp = x.astype(comp_dtype)
    if Bp != B:                                  # skip the pad when aligned
        xp = jnp.pad(xp, ((0, Bp - B), (0, 0)))
    xp = xp.reshape(rows_p, Dp)                  # free row-major reshape

    def stream_spec():
        if input_buffering is not None:
            return pl.BlockSpec((TB, Dp), lambda i: (i, 0),
                                pipeline_mode=pl.Buffered(input_buffering))
        return pl.BlockSpec((TB, Dp), lambda i: (i, 0))

    def resident(a):
        return pl.BlockSpec(a.shape, lambda i: (0,) * a.ndim)

    # TODO(synk): on v7x, pass dimension_semantics=(pltpu.CORE_PARALLEL,) (and
    # keep n_tiles >= 2) to shard the batch axis across both TensorCores.
    out = pl.pallas_call(
        kernel,
        out_shape=jax.ShapeDtypeStruct((rows_p, Dp), out_dtype),
        grid=(n_tiles,),
        in_specs=[stream_spec()] + [resident(w) for w in weights],
        out_specs=stream_spec(),
        compiler_params=pltpu.CompilerParams(
            dimension_semantics=("parallel",)),
    )(xp, *weights)

    out = out.reshape(Bp, D)                     # unpack rows (free reshape)
    return out[:B] if Bp != B else out


# --------------------------------------------------------------------------
# Parameter init (PyTorch nn.Linear-style) and pure-JAX reference
# --------------------------------------------------------------------------

def init_params(key, input_dimension, hidden_dimensions, dtype=jnp.float32):
    """uniform(-1/sqrt(fan_in), 1/sqrt(fan_in)) for weights and biases.
    Weights stored as (in_features, out_features): kernel computes x @ W + b."""
    h0, h1 = hidden_dimensions
    layer_dims = [(input_dimension, h0),   # encoder.0
                  (h0, h1),                # encoder.2
                  (h1, h0),                # decoder.0
                  (h0, input_dimension)]   # decoder.2
    params = {}
    keys = jax.random.split(key, 2 * len(layer_dims))
    for i, (fan_in, fan_out) in enumerate(layer_dims):
        bound = 1.0 / math.sqrt(fan_in)
        params[f"w{i + 1}"] = jax.random.uniform(
            keys[2 * i], (fan_in, fan_out), minval=-bound, maxval=bound,
            dtype=dtype)
        params[f"b{i + 1}"] = jax.random.uniform(
            keys[2 * i + 1], (1, fan_out), minval=-bound, maxval=bound,
            dtype=dtype)
    return params


def autoencoder_ref(x, params):
    """Pure-JAX reference of the (unfused) PyTorch forward pass."""
    h = jnp.maximum(x @ params["w1"] + params["b1"], 0.0)
    z = h @ params["w2"] + params["b2"]
    d = jnp.maximum(z @ params["w3"] + params["b3"], 0.0)
    return d @ params["w4"] + params["b4"]


if __name__ == "__main__":
    # Small shapes consistent with the module: batch=8, input_dim=32, hidden=[16, 8]
    batch = 8
    input_dimension = 32
    hidden_dimensions = [16, 8]

    key = jax.random.PRNGKey(0)
    k_x, k_p = jax.random.split(key)
    x = jax.random.normal(k_x, (batch, input_dimension), dtype=jnp.float32)
    params = init_params(k_p, input_dimension, hidden_dimensions)
    y_ref = autoencoder_ref(x, params)

    # f32, fused middle linears (default path).
    y = jax.block_until_ready(autoencoder_forward(x, params))
    assert y.shape == (batch, input_dimension)
    assert jnp.allclose(y, y_ref, atol=1e-5, rtol=1e-5), "fused f32 mismatch"

    # f32, unfused 4-matmul path (used when H0 is too large to fuse).
    y_u = jax.block_until_ready(
        autoencoder_forward(x, params, fuse_middle=False))
    assert jnp.allclose(y_u, y_ref, atol=1e-5, rtol=1e-5), "unfused f32 mismatch"

    # bf16 staging (production mode on v5e/v6e/v7x); relaxed tolerance.
    y_bf = jax.block_until_ready(
        autoencoder_forward(x, params, use_bf16_inputs=True))
    assert jnp.allclose(y_bf, y_ref, atol=5e-2, rtol=5e-2), "bf16 mismatch"

    print("KERNEL_OK")
</pallas_src>

<mosaic_0001>
module attributes {stable_mosaic.version = 11 : i64} {
  func.func @_ae_fused_kernel(%arg0: i32, %arg1: memref<8x128xf32, #tpu.memory_space<vmem>>, %arg2: memref<128x64xf32, #tpu.memory_space<vmem>>, %arg3: memref<1x64xf32, #tpu.memory_space<vmem>>, %arg4: memref<64x64xf32, #tpu.memory_space<vmem>>, %arg5: memref<1x64xf32, #tpu.memory_space<vmem>>, %arg6: memref<64x128xf32, #tpu.memory_space<vmem>>, %arg7: memref<1x128xf32, #tpu.memory_space<vmem>>, %arg8: memref<8x128xf32, #tpu.memory_space<vmem>>) attributes {dimension_semantics = [#tpu.dimension_semantics<parallel>], iteration_bounds = array<i64: 1>, scalar_prefetch = 0 : i64, scratch_operands = 0 : i64, tpu.core_type = #tpu.core_type<tc>, window_params = [{transform_indices = @transform_0, window_bounds = array<i64: 8, 128>}, {pipeline_mode = #tpu.pipeline_mode<synchronous>, transform_indices = @transform_1, window_bounds = array<i64: 128, 64>}, {pipeline_mode = #tpu.pipeline_mode<synchronous>, transform_indices = @transform_2, window_bounds = array<i64: 1, 64>}, {pipeline_mode = #tpu.pipeline_mode<synchronous>, transform_indices = @transform_3, window_bounds = array<i64: 64, 64>}, {pipeline_mode = #tpu.pipeline_mode<synchronous>, transform_indices = @transform_4, window_bounds = array<i64: 1, 64>}, {pipeline_mode = #tpu.pipeline_mode<synchronous>, transform_indices = @transform_5, window_bounds = array<i64: 64, 128>}, {pipeline_mode = #tpu.pipeline_mode<synchronous>, transform_indices = @transform_6, window_bounds = array<i64: 1, 128>}, {transform_indices = @transform_7, window_bounds = array<i64: 8, 128>}]} {
    %c0 = arith.constant 0 : index
    %c0_0 = arith.constant 0 : index
    %0 = vector.load %arg1[%c0, %c0_0] : memref<8x128xf32, #tpu.memory_space<vmem>>, vector<8x128xf32>
    %c0_1 = arith.constant 0 : index
    %c0_2 = arith.constant 0 : index
    %1 = vector.load %arg2[%c0_1, %c0_2] : memref<128x64xf32, #tpu.memory_space<vmem>>, vector<128x64xf32>
    %cst = arith.constant dense<0.000000e+00> : vector<8x64xf32>
    %2 = tpu.matmul %0, %1, %cst {dimension_numbers = #tpu.dot_dimension_numbers<[1], [0], [0], [1], [0, 0, 1, 1], [], []>} : vector<8x128xf32>, vector<128x64xf32>, vector<8x64xf32> -> vector<8x64xf32>
    %c0_3 = arith.constant 0 : index
    %c0_4 = arith.constant 0 : index
    %3 = vector.load %arg3[%c0_3, %c0_4] : memref<1x64xf32, #tpu.memory_space<vmem>>, vector<1x64xf32>
    %4 = vector.broadcast %3 : vector<1x64xf32> to vector<8x64xf32>
    %5 = arith.addf %2, %4 : vector<8x64xf32>
    %cst_5 = arith.constant 0.000000e+00 : f32
    %6 = vector.broadcast %cst_5 : f32 to vector<8x64xf32>
    %7 = arith.maximumf %5, %6 : vector<8x64xf32>
    %c0_6 = arith.constant 0 : index
    %c0_7 = arith.constant 0 : index
    %8 = vector.load %arg4[%c0_6, %c0_7] : memref<64x64xf32, #tpu.memory_space<vmem>>, vector<64x64xf32>
    %cst_8 = arith.constant dense<0.000000e+00> : vector<8x64xf32>
    %9 = tpu.matmul %7, %8, %cst_8 {dimension_numbers = #tpu.dot_dimension_numbers<[1], [0], [0], [1], [0, 0, 1, 1], [], []>} : vector<8x64xf32>, vector<64x64xf32>, vector<8x64xf32> -> vector<8x64xf32>
    %c0_9 = arith.constant 0 : index
    %c0_10 = arith.constant 0 : index
    %10 = vector.load %arg5[%c0_9, %c0_10] : memref<1x64xf32, #tpu.memory_space<vmem>>, vector<1x64xf32>
    %11 = vector.broadcast %10 : vector<1x64xf32> to vector<8x64xf32>
    %12 = arith.addf %9, %11 : vector<8x64xf32>
    %cst_11 = arith.constant 0.000000e+00 : f32
    %13 = vector.broadcast %cst_11 : f32 to vector<8x64xf32>
    %14 = arith.maximumf %12, %13 : vector<8x64xf32>
    %c0_12 = arith.constant 0 : index
    %c0_13 = arith.constant 0 : index
    %15 = vector.load %arg6[%c0_12, %c0_13] : memref<64x128xf32, #tpu.memory_space<vmem>>, vector<64x128xf32>
    %cst_14 = arith.constant dense<0.000000e+00> : vector<8x128xf32>
    %16 = tpu.matmul %14, %15, %cst_14 {dimension_numbers = #tpu.dot_dimension_numbers<[1], [0], [0], [1], [0, 0, 1, 1], [], []>} : vector<8x64xf32>, vector<64x128xf32>, vector<8x128xf32> -> vector<8x128xf32>
    %c0_15 = arith.constant 0 : index
    %c0_16 = arith.constant 0 : index
    %17 = vector.load %arg7[%c0_15, %c0_16] : memref<1x128xf32, #tpu.memory_space<vmem>>, vector<1x128xf32>
    %18 = vector.broadcast %17 : vector<1x128xf32> to vector<8x128xf32>
    %19 = arith.addf %16, %18 : vector<8x128xf32>
    %c0_17 = arith.constant 0 : index
    %c0_18 = arith.constant 0 : index
    %20 = vector.load %arg8[%c0_17, %c0_18] : memref<8x128xf32, #tpu.memory_space<vmem>>, vector<8x128xf32>
    tpu.vector_store %arg8[%c0_17, %c0_18], %19 {strides = array<i32>} : memref<8x128xf32, #tpu.memory_space<vmem>>, vector<8x128xf32>,
    return
  }
  func.func @transform_0(%arg0: i32) -> (i32, i32) {
    %c0_i32 = arith.constant 0 : i32
    %c0_i32_0 = arith.constant 0 : i32
    return %arg0, %c0_i32 : i32, i32
  }
  func.func @transform_1(%arg0: i32) -> (i32, i32) {
    %c0_i32 = arith.constant 0 : i32
    %c0_i32_0 = arith.constant 0 : i32
    %c0_i32_1 = arith.constant 0 : i32
    return %c0_i32, %c0_i32_0 : i32, i32
  }
  func.func @transform_2(%arg0: i32) -> (i32, i32) {
    %c0_i32 = arith.constant 0 : i32
    %c0_i32_0 = arith.constant 0 : i32
    %c0_i32_1 = arith.constant 0 : i32
    return %c0_i32, %c0_i32_0 : i32, i32
  }
  func.func @transform_3(%arg0: i32) -> (i32, i32) {
    %c0_i32 = arith.constant 0 : i32
    %c0_i32_0 = arith.constant 0 : i32
    %c0_i32_1 = arith.constant 0 : i32
    return %c0_i32, %c0_i32_0 : i32, i32
  }
  func.func @transform_4(%arg0: i32) -> (i32, i32) {
    %c0_i32 = arith.constant 0 : i32
    %c0_i32_0 = arith.constant 0 : i32
    %c0_i32_1 = arith.constant 0 : i32
    return %c0_i32, %c0_i32_0 : i32, i32
  }
  func.func @transform_5(%arg0: i32) -> (i32, i32) {
    %c0_i32 = arith.constant 0 : i32
    %c0_i32_0 = arith.constant 0 : i32
    %c0_i32_1 = arith.constant 0 : i32
    return %c0_i32, %c0_i32_0 : i32, i32
  }
  func.func @transform_6(%arg0: i32) -> (i32, i32) {
    %c0_i32 = arith.constant 0 : i32
    %c0_i32_0 = arith.constant 0 : i32
    %c0_i32_1 = arith.constant 0 : i32
    return %c0_i32, %c0_i32_0 : i32, i32
  }
  func.func @transform_7(%arg0: i32) -> (i32, i32) {
    %c0_i32 = arith.constant 0 : i32
    %c0_i32_0 = arith.constant 0 : i32
    return %arg0, %c0_i32 : i32, i32
  }
}

</mosaic_0001>

<llo_original>
// kernel: tpu_custom_call.1
$region0: #{tpu_custom_call.1}
  #allocation0 [shape = 'u32[]', space=smem, size = 0x4, offset = 0x4, fixed_abs, tag = 'smem constant byte address 0x4 - core index']
  #allocation1 [shape = 'u32[144,128]{1,0:T(1,128)}', space=vmem, size = 0x12000, scoped, tag = 'internal scratch']
  %s0 = inlined_call_operand.vmem [shape: f32[8,128], index: 0, kind: input, shape index: {}]
  %s1 = inlined_call_operand.vmem [shape: f32[128,64], index: 1, kind: input, shape index: {}]
  %s2 = inlined_call_operand.vmem [shape: f32[1,64], index: 2, kind: input, shape index: {}]
  %s3 = inlined_call_operand.vmem [shape: f32[64,64], index: 3, kind: input, shape index: {}]
  %s4 = inlined_call_operand.vmem [shape: f32[1,64], index: 4, kind: input, shape index: {}]
  %s5 = inlined_call_operand.vmem [shape: f32[64,128], index: 5, kind: input, shape index: {}]
  %s6 = inlined_call_operand.vmem [shape: f32[1,128], index: 6, kind: input, shape index: {}]
  %s7 = inlined_call_operand.hbm [shape: f32[8,128], index: 7, kind: output, shape index: {}]
  %s8 = sld [smem:[#allocation0]]
  $region38: #{tpu_custom_call.1} parent=0
    _
  %s10 = ssub.s32 1, %s8
  %s11 = scalar_select 0, %s10, %s8
  $region1: #{tpu_custom_call.1} parent=0
    #allocation2 [shape = 'u8[4096]{0}', space=vmem, size = 0x1000, scoped, tag = 'output window, operand 0, single buffered']
    #allocation3 [shape = 's32[1]{0}', space=sflag, size = 0x4, scoped, tag = 'scoped memory for tpu_custom_call.1']
    %12 = vsyncpa [#allocation3], 0
    // Predicated region
    $region2: #{tpu_custom_call.1} parent=1 // pred_check
      _
    $region3: #{tpu_custom_call.1} parent=1 // pred_check_branch
      %14 = sbr.rel (0) target = $region5
    $region4: #{tpu_custom_call.1} parent=1 // pred_region
      _
    $region5: #{tpu_custom_call.1} parent=1 // pred_fallthru
      _
    // Predicated region
    $region6: #{tpu_custom_call.1} parent=1 // pred_check
      _
    $region7: #{tpu_custom_call.1} parent=1 // pred_check_branch
      %16 = sbr.rel (0) target = $region9
    $region8: #{tpu_custom_call.1} parent=1 // pred_region
      _
    $region9: #{tpu_custom_call.1} parent=1 // pred_fallthru
      _
    // Predicated region
    $region10: #{tpu_custom_call.1} parent=1 // pred_check
      _
    $region11: #{tpu_custom_call.1} parent=1 // pred_check_branch
      %18 = sbr.rel (0) target = $region13
    $region12: #{tpu_custom_call.1} parent=1 // pred_region
      _
    $region13: #{tpu_custom_call.1} parent=1 // pred_fallthru
      _
    // Predicated region
    $region14: #{tpu_custom_call.1} parent=1 // pred_check
      _
    $region15: #{tpu_custom_call.1} parent=1 // pred_check_branch
      %20 = sbr.rel (0) target = $region17
    $region16: #{tpu_custom_call.1} parent=1 // pred_region
      _
    $region17: #{tpu_custom_call.1} parent=1 // pred_fallthru
      _
    // Predicated region
    $region18: #{tpu_custom_call.1} parent=1 // pred_check
      _
    $region19: #{tpu_custom_call.1} parent=1 // pred_check_branch
      %22 = sbr.rel (0) target = $region21
    $region20: #{tpu_custom_call.1} parent=1 // pred_region
      _
    $region21: #{tpu_custom_call.1} parent=1 // pred_fallthru
      _
    // Predicated region
    $region22: #{tpu_custom_call.1} parent=1 // pred_check
      _
    $region23: #{tpu_custom_call.1} parent=1 // pred_check_branch
      %24 = sbr.rel (0) target = $region25
    $region24: #{tpu_custom_call.1} parent=1 // pred_region
      _
    $region25: #{tpu_custom_call.1} parent=1 // pred_fallthru
      _
    // Predicated region
    $region26: #{tpu_custom_call.1} parent=1 // pred_check
      _
    $region27: #{tpu_custom_call.1} parent=1 // pred_check_branch
      %26 = sbr.rel (0) target = $region29
    $region28: #{tpu_custom_call.1} parent=1 // pred_region
      _
    $region29: #{tpu_custom_call.1} parent=1 // pred_fallthru
      _
    %v27 = vld [vmem:[%s0] sm:$0xff]
    %v28 = vld [vmem:[%s1] sm:$0xff]
    %v29 = vld [vmem:[%s1 + $0x8] sm:$0xff]
    %v30 = vld [vmem:[%s1 + $0x10] sm:$0xff]
    %v31 = vld [vmem:[%s1 + $0x18] sm:$0xff]
    %v32 = vld [vmem:[%s1 + $0x20] sm:$0xff]
    %v33 = vld [vmem:[%s1 + $0x28] sm:$0xff]
    %v34 = vld [vmem:[%s1 + $0x30] sm:$0xff]
    %v35 = vld [vmem:[%s1 + $0x38] sm:$0xff]
    %v36 = vld [vmem:[%s1 + $0x40] sm:$0xff]
    %v37 = vld [vmem:[%s1 + $0x48] sm:$0xff]
    %v38 = vld [vmem:[%s1 + $0x50] sm:$0xff]
    %v39 = vld [vmem:[%s1 + $0x58] sm:$0xff]
    %v40 = vld [vmem:[%s1 + $0x60] sm:$0xff]
    %v41 = vld [vmem:[%s1 + $0x68] sm:$0xff]
    %v42 = vld [vmem:[%s1 + $0x70] sm:$0xff]
    %v43 = vld [vmem:[%s1 + $0x78] sm:$0xff]
    %v44 = vld [vmem:[%s2] sm:$0x1]
    %v46 = vlaneseq
    %v47 = vshrl.u32 %v46, 7
    %v48 = vsub.s32 0, %v47
    %v49 = vrot.slane %v44, %v48
    %51 = vmatprep.subr.mxu0 0.0
    %52 = vmatpush1.msra.mxu0 %v28
    %53 = vmatprep.subr.mxu0 0.0
    %54 = vmatpush1.msra.mxu0 %v29
    %55 = vmatprep.subr.mxu0 0.0
    %56 = vmatpush1.msra.mxu0 %v30
    %57 = vmatprep.subr.mxu0 0.0
    %58 = vmatpush1.msra.mxu0 %v31
    %59 = vmatprep.subr.mxu0 0.0
    %60 = vmatpush1.msra.mxu0 %v32
    %61 = vmatprep.subr.mxu0 0.0
    %62 = vmatpush1.msra.mxu0 %v33
    %63 = vmatprep.subr.mxu0 0.0
    %64 = vmatpush1.msra.mxu0 %v34
    %65 = vmatprep.subr.mxu0 0.0
    %66 = vmatpush1.msra.mxu0 %v35
    %67 = vmatprep.subr.mxu0 0.0
    %68 = vmatpush1.msra.mxu0 %v36
    %69 = vmatprep.subr.mxu0 0.0
    %70 = vmatpush1.msra.mxu0 %v37
    %71 = vmatprep.subr.mxu0 0.0
    %72 = vmatpush1.msra.mxu0 %v38
    %73 = vmatprep.subr.mxu0 0.0
    %74 = vmatpush1.msra.mxu0 %v39
    %75 = vmatprep.subr.mxu0 0.0
    %76 = vmatpush1.msra.mxu0 %v40
    %77 = vmatprep.subr.mxu0 0.0
    %78 = vmatpush1.msra.mxu0 %v41
    %79 = vmatprep.subr.mxu0 0.0
    %80 = vmatpush1.msra.mxu0 %v42
    %81 = vmatprep.subr.mxu0 0.0
    %82 = vmatpush1.msra.mxu0 %v43
    %83 = vmatprep.subr.mxu0 0.0
    %84 = vmatpush1.msra.mxu0 0.0
    %85 = vmatprep.subr.mxu0 0.0
    %86 = vmatpush1.msra.mxu0 0.0
    %87 = vmatprep.subr.mxu0 0.0
    %88 = vmatpush1.msra.mxu0 0.0
    %89 = vmatprep.subr.mxu0 0.0
    %90 = vmatpush1.msra.mxu0 0.0
    %91 = vmatprep.subr.mxu0 0.0
    %92 = vmatpush1.msra.mxu0 0.0
    %93 = vmatprep.subr.mxu0 0.0
    %94 = vmatpush1.msra.mxu0 0.0
    %95 = vmatprep.subr.mxu0 0.0
    %96 = vmatpush1.msra.mxu0 0.0
    %97 = vmatprep.subr.mxu0 0.0
    %98 = vmatpush1.msra.mxu0 0.0
    %99 = vmatprep.subr.mxu0 0.0
    %100 = vmatpush1.msra.mxu0 0.0
    %101 = vmatprep.subr.mxu0 0.0
    %102 = vmatpush1.msra.mxu0 0.0
    %103 = vmatprep.subr.mxu0 0.0
    %104 = vmatpush1.msra.mxu0 0.0
    %105 = vmatprep.subr.mxu0 0.0
    %106 = vmatpush1.msra.mxu0 0.0
    %107 = vmatprep.subr.mxu0 0.0
    %108 = vmatpush1.msra.mxu0 0.0
    %109 = vmatprep.subr.mxu0 0.0
    %110 = vmatpush1.msra.mxu0 0.0
    %111 = vmatprep.subr.mxu0 0.0
    %112 = vmatpush1.msra.mxu0 0.0
    %113 = vmatprep.subr.mxu0 0.0
    %114 = vmatpush1.msra.mxu0 0.0
    %115 = vmatprep.mubr.f32.mxu0 0.0
    %116 = vmatmul.mubr.f32.gmra.mrb[0].mxu0 %v27
    %v117 = vpop.f32.mrb[0].mxu0
    %v118 = vadd.f32 %v49, %v117
    %v119 = vpop.f32.mrb[0].mxu0
    %120 = vdwg.mxu0
    %v121 = vmax.f32 %v118, 0.0
    %v122 = vld [vmem:[%s3] sm:$0xff]
    %v123 = vld [vmem:[%s3 + $0x8] sm:$0xff]
    %v124 = vld [vmem:[%s3 + $0x10] sm:$0xff]
    %v125 = vld [vmem:[%s3 + $0x18] sm:$0xff]
    %v126 = vld [vmem:[%s3 + $0x20] sm:$0xff]
    %v127 = vld [vmem:[%s3 + $0x28] sm:$0xff]
    %v128 = vld [vmem:[%s3 + $0x30] sm:$0xff]
    %v129 = vld [vmem:[%s3 + $0x38] sm:$0xff]
    %v130 = vld [vmem:[%s4] sm:$0x1]
    %v132 = vlaneseq
    %v133 = vshrl.u32 %v132, 7
    %v134 = vsub.s32 0, %v133
    %v135 = vrot.slane %v130, %v134
    %vm137 = vcmask 523264
    %v139 = vsel %vm137, %v121, 0
    %141 = vmatprep.subr.mxu0 0.0
    %142 = vmatpush1.msra.mxu0 %v122
    %143 = vmatprep.subr.mxu0 0.0
    %144 = vmatpush1.msra.mxu0 %v123
    %145 = vmatprep.subr.mxu0 0.0
    %146 = vmatpush1.msra.mxu0 %v124
    %147 = vmatprep.subr.mxu0 0.0
    %148 = vmatpush1.msra.mxu0 %v125
    %149 = vmatprep.subr.mxu0 0.0
    %150 = vmatpush1.msra.mxu0 %v126
    %151 = vmatprep.subr.mxu0 0.0
    %152 = vmatpush1.msra.mxu0 %v127
    %153 = vmatprep.subr.mxu0 0.0
    %154 = vmatpush1.msra.mxu0 %v128
    %155 = vmatprep.subr.mxu0 0.0
    %156 = vmatpush1.msra.mxu0 %v129
    %157 = vmatprep.subr.mxu0 0.0
    %158 = vmatpush1.msra.mxu0 0.0
    %159 = vmatprep.subr.mxu0 0.0
    %160 = vmatpush1.msra.mxu0 0.0
    %161 = vmatprep.subr.mxu0 0.0
    %162 = vmatpush1.msra.mxu0 0.0
    %163 = vmatprep.subr.mxu0 0.0
    %164 = vmatpush1.msra.mxu0 0.0
    %165 = vmatprep.subr.mxu0 0.0
    %166 = vmatpush1.msra.mxu0 0.0
    %167 = vmatprep.subr.mxu0 0.0
    %168 = vmatpush1.msra.mxu0 0.0
    %169 = vmatprep.subr.mxu0 0.0
    %170 = vmatpush1.msra.mxu0 0.0
    %171 = vmatprep.subr.mxu0 0.0
    %172 = vmatpush1.msra.mxu0 0.0
    %173 = vmatprep.subr.mxu0 0.0
    %174 = vmatpush1.msra.mxu0 0.0
    %175 = vmatprep.subr.mxu0 0.0
    %176 = vmatpush1.msra.mxu0 0.0
    %177 = vmatprep.subr.mxu0 0.0
    %178 = vmatpush1.msra.mxu0 0.0
    %179 = vmatprep.subr.mxu0 0.0
    %180 = vmatpush1.msra.mxu0 0.0
    %181 = vmatprep.subr.mxu0 0.0
    %182 = vmatpush1.msra.mxu0 0.0
    %183 = vmatprep.subr.mxu0 0.0
    %184 = vmatpush1.msra.mxu0 0.0
    %185 = vmatprep.subr.mxu0 0.0
    %186 = vmatpush1.msra.mxu0 0.0
    %187 = vmatprep.subr.mxu0 0.0
    %188 = vmatpush1.msra.mxu0 0.0
    %189 = vmatprep.subr.mxu0 0.0
    %190 = vmatpush1.msra.mxu0 0.0
    %191 = vmatprep.subr.mxu0 0.0
    %192 = vmatpush1.msra.mxu0 0.0
    %193 = vmatprep.subr.mxu0 0.0
    %194 = vmatpush1.msra.mxu0 0.0
    %195 = vmatprep.subr.mxu0 0.0
    %196 = vmatpush1.msra.mxu0 0.0
    %197 = vmatprep.subr.mxu0 0.0
    %198 = vmatpush1.msra.mxu0 0.0
    %199 = vmatprep.subr.mxu0 0.0
    %200 = vmatpush1.msra.mxu0 0.0
    %201 = vmatprep.subr.mxu0 0.0
    %202 = vmatpush1.msra.mxu0 0.0
    %203 = vmatprep.subr.mxu0 0.0
    %204 = vmatpush1.msra.mxu0 0.0
    %205 = vmatprep.mubr.f32.mxu0 0.0
    %206 = vmatmul.mubr.f32.gmra.mrb[0].mxu0 %v139
    %v207 = vpop.f32.mrb[0].mxu0
    %v208 = vadd.f32 %v135, %v207
    %v209 = vpop.f32.mrb[0].mxu0
    %210 = vdwg.mxu0
    %v211 = vmax.f32 %v208, 0.0
    %v212 = vld [vmem:[%s5] sm:$0xff]
    %v213 = vld [vmem:[%s5 + $0x8] sm:$0xff]
    %v214 = vld [vmem:[%s5 + $0x10] sm:$0xff]
    %v215 = vld [vmem:[%s5 + $0x18] sm:$0xff]
    %v216 = vld [vmem:[%s5 + $0x20] sm:$0xff]
    %v217 = vld [vmem:[%s5 + $0x28] sm:$0xff]
    %v218 = vld [vmem:[%s5 + $0x30] sm:$0xff]
    %v219 = vld [vmem:[%s5 + $0x38] sm:$0xff]
    %v220 = vld [vmem:[%s6] sm:$0x1]
    %v222 = vlaneseq
    %v223 = vshrl.u32 %v222, 7
    %v224 = vsub.s32 0, %v223
    %v225 = vrot.slane %v220, %v224
    %v228 = vsel %vm137, %v211, 0
    %230 = vmatprep.subr.mxu0 0.0
    %231 = vmatpush1.msra.mxu0 %v212
    %232 = vmatprep.subr.mxu0 0.0
    %233 = vmatpush1.msra.mxu0 %v213
    %234 = vmatprep.subr.mxu0 0.0
    %235 = vmatpush1.msra.mxu0 %v214
    %236 = vmatprep.subr.mxu0 0.0
    %237 = vmatpush1.msra.mxu0 %v215
    %238 = vmatprep.subr.mxu0 0.0
    %239 = vmatpush1.msra.mxu0 %v216
    %240 = vmatprep.subr.mxu0 0.0
    %241 = vmatpush1.msra.mxu0 %v217
    %242 = vmatprep.subr.mxu0 0.0
    %243 = vmatpush1.msra.mxu0 %v218
    %244 = vmatprep.subr.mxu0 0.0
    %245 = vmatpush1.msra.mxu0 %v219
    %246 = vmatprep.subr.mxu0 0.0
    %247 = vmatpush1.msra.mxu0 0.0
    %248 = vmatprep.subr.mxu0 0.0
    %249 = vmatpush1.msra.mxu0 0.0
    %250 = vmatprep.subr.mxu0 0.0
    %251 = vmatpush1.msra.mxu0 0.0
    %252 = vmatprep.subr.mxu0 0.0
    %253 = vmatpush1.msra.mxu0 0.0
    %254 = vmatprep.subr.mxu0 0.0
    %255 = vmatpush1.msra.mxu0 0.0
    %256 = vmatprep.subr.mxu0 0.0
    %257 = vmatpush1.msra.mxu0 0.0
    %258 = vmatprep.subr.mxu0 0.0
    %259 = vmatpush1.msra.mxu0 0.0
    %260 = vmatprep.subr.mxu0 0.0
    %261 = vmatpush1.msra.mxu0 0.0
    %262 = vmatprep.subr.mxu0 0.0
    %263 = vmatpush1.msra.mxu0 0.0
    %264 = vmatprep.subr.mxu0 0.0
    %265 = vmatpush1.msra.mxu0 0.0
    %266 = vmatprep.subr.mxu0 0.0
    %267 = vmatpush1.msra.mxu0 0.0
    %268 = vmatprep.subr.mxu0 0.0
    %269 = vmatpush1.msra.mxu0 0.0
    %270 = vmatprep.subr.mxu0 0.0
    %271 = vmatpush1.msra.mxu0 0.0
    %272 = vmatprep.subr.mxu0 0.0
    %273 = vmatpush1.msra.mxu0 0.0
    %274 = vmatprep.subr.mxu0 0.0
    %275 = vmatpush1.msra.mxu0 0.0
    %276 = vmatprep.subr.mxu0 0.0
    %277 = vmatpush1.msra.mxu0 0.0
    %278 = vmatprep.subr.mxu0 0.0
    %279 = vmatpush1.msra.mxu0 0.0
    %280 = vmatprep.subr.mxu0 0.0
    %281 = vmatpush1.msra.mxu0 0.0
    %282 = vmatprep.subr.mxu0 0.0
    %283 = vmatpush1.msra.mxu0 0.0
    %284 = vmatprep.subr.mxu0 0.0
    %285 = vmatpush1.msra.mxu0 0.0
    %286 = vmatprep.subr.mxu0 0.0
    %287 = vmatpush1.msra.mxu0 0.0
    %288 = vmatprep.subr.mxu0 0.0
    %289 = vmatpush1.msra.mxu0 0.0
    %290 = vmatprep.subr.mxu0 0.0
    %291 = vmatpush1.msra.mxu0 0.0
    %292 = vmatprep.subr.mxu0 0.0
    %293 = vmatpush1.msra.mxu0 0.0
    %294 = vmatprep.mubr.f32.mxu0 0.0
    %295 = vmatmul.mubr.f32.gmra.mrb[0].mxu0 %v228
    %v296 = vpop.f32.mrb[0].mxu0
    %v297 = vadd.f32 %v225, %v296
    %v298 = vpop.f32.mrb[0].mxu0
    %299 = vdwg.mxu0
    %300 = vst [vmem:[#allocation2] sm:$0xff] %v297
    // Predicated region
    $region30: #{tpu_custom_call.1} parent=1 // pred_check
      _
    $region31: #{tpu_custom_call.1} parent=1 // pred_check_branch
      %302 = sbr.rel (0) target = $region33
    $region32: #{tpu_custom_call.1} parent=1 // pred_region
      %s304 = ssub.s32 128, 128
      %305 = vsyncadd [#allocation3], %s304
      %s307 = sshll.u32 [#allocation2], 4
      %s308 = int_to_ptr.vmem [resolvable:$true] %s307
      %310 = dma.vmem_to_hbm [thread:$0]  %s308, 128, %s7, [#allocation3]
    $region33: #{tpu_custom_call.1} parent=1 // pred_fallthru
      _
    // Predicated region
    $region34: #{tpu_custom_call.1} parent=1 // pred_check
      _
    $region35: #{tpu_custom_call.1} parent=1 // pred_check_branch
      %312 = sbr.rel (0) target = $region37
    $region36: #{tpu_custom_call.1} parent=1 // pred_region
      %313 = dma.done [#allocation3], 128
    $region37: #{tpu_custom_call.1} parent=1 // pred_fallthru
      _
    %314 = vsyncpa [#allocation3], 1

</llo_original>
